<compile_context>
chip_gen: v5e
topology: v5e:2x2
jax: 0.10.0
libtpu: 0.0.40
codegen_flags: <defaults>
</compile_context>

<pallas_src>
import jax
import jax.numpy as jnp
from jax import lax
from jax.experimental import pallas as pl
from jax.experimental.pallas import tpu as pltpu


# bf16 weight streaming (f32 accumulate).  Use jnp.float32 for exact parity
# with the PyTorch f32 module at the cost of ~2x weight HBM traffic.
WEIGHT_STREAM_DTYPE = jnp.bfloat16


def _dense_single_kernel(x_ref, w_ref, b_ref, o_ref):
    """out = x @ W.T + b in one shot (feat fits in a single K tile)."""
    x = x_ref[...].astype(w_ref.dtype)
    acc = lax.dot_general(
        x,
        w_ref[...],
        dimension_numbers=(((1,), (1,)), ((), ())),
        preferred_element_type=jnp.float32,
    )
    o_ref[...] = (acc + b_ref[...]).astype(o_ref.dtype)


def _dense_ktiled_kernel(x_ref, w_ref, b_ref, o_ref):
    """K-tiled out = x @ W.T + b, accumulating directly into the resident
    f32 output block (no separate VMEM scratch)."""
    k = pl.program_id(1)

    @pl.when(k == 0)
    def _init():
        o_ref[...] = jnp.zeros_like(o_ref)

    x = x_ref[...].astype(w_ref.dtype)
    o_ref[...] += lax.dot_general(
        x,
        w_ref[...],
        dimension_numbers=(((1,), (1,)), ((), ())),
        preferred_element_type=jnp.float32,
    )

    @pl.when(k == pl.num_programs(1) - 1)
    def _finalize():
        o_ref[...] += b_ref[...]


def _vmem_budgets():
    """Per-generation VMEM budget for the double-buffered input blocks and an
    explicit scoped-VMEM limit (v5e/v6e: 128 MiB physical; v7x: 64 MiB/TC)."""
    try:
        cap = pltpu.get_tpu_info().vmem_capacity_bytes
    except Exception:  # be robust if the query is unavailable
        cap = 64 * 1024 * 1024
    block_budget = min(24 * 1024 * 1024, cap // 3)
    vmem_limit = int(min(cap, block_budget + 8 * 1024 * 1024))
    return block_budget, vmem_limit


def _choose_tiles(batch, feat, w_itemsize, block_budget):
    """Pick (batch_tile, k_tile).  k_tile is the largest multiple of 128 that
    divides feat and keeps the double-buffered input blocks inside budget."""
    # Batch tile: whole batch unless it is large and lane/sublane friendly
    # (a >1 batch grid gives v7x's second TensorCore something to do).
    if batch >= 256 and batch % 128 == 0:
        tb = 128
    else:
        tb = batch
    tb_pad = -(-tb // 8) * 8            # x block sublane padding
    w_pad = 16                          # 10 out-rows pad to 16 sublanes
    per_k_col = 2 * (tb_pad * 4 + w_pad * w_itemsize)   # double-buffered
    cap = max(128, (block_budget // per_k_col) // 128 * 128)
    if feat <= cap:
        return tb, feat
    assert feat % 128 == 0, "feat = C*32*32 must be a multiple of 128"
    tk = cap
    while feat % tk != 0:               # terminates: 128 divides feat
        tk -= 128
    return tb, tk


@jax.jit
def prediction_layer(x, weight, bias):
    """Pallas implementation of `predictionlayer.forward`.

    Args:
      x:      (B, S, C, 32, 32) float32
      weight: (10, C*32*32)     float32 (PyTorch nn.Linear (out, in) layout)
      bias:   (10,)             float32
    Returns:
      (B, 10) float32  ==  x[:, 0].reshape(B, -1) @ weight.T + bias
    """
    B, S, C = x.shape[0], x.shape[1], x.shape[2]
    feat = C * x.shape[3] * x.shape[4]
    n_out = weight.shape[0]

    # Free, contiguous reshape: row-major (s, c, y, x) flattening means the
    # first `feat` columns of each row are exactly the s=0 slab, so the
    # BlockSpecs below DMA only that slab straight from HBM.
    x2 = x.reshape(B, S * feat)
    w = weight.astype(WEIGHT_STREAM_DTYPE)
    b2 = bias.astype(jnp.float32).reshape(1, n_out)

    block_budget, vmem_limit = _vmem_budgets()
    tb, tk = _choose_tiles(B, feat, jnp.dtype(w.dtype).itemsize, block_budget)
    b_steps = B // tb
    k_steps = feat // tk

    cost = pl.CostEstimate(
        flops=2 * B * feat * n_out,
        transcendentals=0,
        bytes_accessed=(x2.dtype.itemsize * B * feat
                        + jnp.dtype(w.dtype).itemsize * n_out * feat
                        + 4 * (n_out + B * n_out)),
    )

    if k_steps == 1:
        # Common case: one K tile -> no reduction grid, no phase gating.
        grid = (b_steps,)
        in_specs = [
            pl.BlockSpec((tb, tk), lambda b: (b, 0)),       # s=0 activations
            pl.BlockSpec((n_out, tk), lambda b: (0, 0)),    # native (10,feat) W
            pl.BlockSpec((1, n_out), lambda b: (0, 0)),     # bias
        ]
        out_specs = pl.BlockSpec((tb, n_out), lambda b: (b, 0))
        kernel = _dense_single_kernel
        dims = ("parallel",)
    else:
        grid = (b_steps, k_steps)
        in_specs = [
            pl.BlockSpec((tb, tk), lambda b, k: (b, k)),
            pl.BlockSpec((n_out, tk), lambda b, k: (0, k)),
            pl.BlockSpec((1, n_out), lambda b, k: (0, 0)),
        ]
        out_specs = pl.BlockSpec((tb, n_out), lambda b, k: (b, 0))
        kernel = _dense_ktiled_kernel
        dims = ("parallel", "arbitrary")    # K is a reduction axis

    out = pl.pallas_call(
        kernel,
        out_shape=jax.ShapeDtypeStruct((B, n_out), jnp.float32),
        grid=grid,
        in_specs=in_specs,
        out_specs=out_specs,
        compiler_params=pltpu.CompilerParams(
            dimension_semantics=dims,
            vmem_limit_bytes=vmem_limit,
        ),
        cost_estimate=cost,
    )(x2, w, b2)
    return out


if __name__ == "__main__":
    key = jax.random.PRNGKey(0)
    k_x, k_w, k_b = jax.random.split(key, 3)

    B, S, C, H, W = 2, 3, 4, 32, 32   # module hard-codes 32x32 spatial
    feat = C * H * W

    x = jax.random.normal(k_x, (B, S, C, H, W), dtype=jnp.float32)
    # Deterministic synthetic parameters (PyTorch nn.Linear shapes).
    weight = jax.random.normal(k_w, (10, feat), dtype=jnp.float32) * 0.02
    bias = jax.random.normal(k_b, (10,), dtype=jnp.float32) * 0.02

    out = prediction_layer(x, weight, bias)
    jax.block_until_ready(out)
    assert out.shape == (B, 10)

    x0 = x[:, 0].reshape(B, feat)

    # Tight check against a reference that uses the same bf16-rounded operands
    # (the kernel accumulates exact bf16 products in f32).
    x_r = x0.astype(jnp.bfloat16).astype(jnp.float32)
    w_r = weight.astype(jnp.bfloat16).astype(jnp.float32)
    ref_stream = jnp.dot(x_r, w_r.T, precision=lax.Precision.HIGHEST) + bias
    assert jnp.allclose(out, ref_stream, atol=2e-3, rtol=2e-3)

    # Loose check against the pure-f32 PyTorch-equivalent reference
    # (bf16 weight/activation streaming costs ~1e-2 absolute at these scales).
    ref_f32 = jnp.dot(x0, weight.T, precision=lax.Precision.HIGHEST) + bias
    assert jnp.allclose(out, ref_f32, atol=5e-2, rtol=5e-2)

    print("KERNEL_OK")
</pallas_src>

<mosaic_0001>
module attributes {stable_mosaic.version = 11 : i64} {
  func.func @_dense_single_kernel(%arg0: i32, %arg1: memref<2x4096xf32, #tpu.memory_space<vmem>>, %arg2: memref<10x4096xbf16, #tpu.memory_space<vmem>>, %arg3: memref<1x10xf32, #tpu.memory_space<vmem>>, %arg4: memref<2x10xf32, #tpu.memory_space<vmem>>) attributes {dimension_semantics = [#tpu.dimension_semantics<parallel>], iteration_bounds = array<i64: 1>, scalar_prefetch = 0 : i64, scratch_operands = 0 : i64, tpu.core_type = #tpu.core_type<tc>, window_params = [{transform_indices = @transform_0, window_bounds = array<i64: 2, 4096>}, {pipeline_mode = #tpu.pipeline_mode<synchronous>, transform_indices = @transform_1, window_bounds = array<i64: 10, 4096>}, {pipeline_mode = #tpu.pipeline_mode<synchronous>, transform_indices = @transform_2, window_bounds = array<i64: 1, 10>}, {transform_indices = @transform_3, window_bounds = array<i64: 2, 10>}]} {
    %c0 = arith.constant 0 : index
    %c0_0 = arith.constant 0 : index
    %0 = vector.load %arg1[%c0, %c0_0] : memref<2x4096xf32, #tpu.memory_space<vmem>>, vector<2x4096xf32>
    %1 = arith.truncf %0 : vector<2x4096xf32> to vector<2x4096xbf16>
    %c0_1 = arith.constant 0 : index
    %c0_2 = arith.constant 0 : index
    %2 = vector.load %arg2[%c0_1, %c0_2] : memref<10x4096xbf16, #tpu.memory_space<vmem>>, vector<10x4096xbf16>
    %cst = arith.constant dense<0.000000e+00> : vector<2x10xf32>
    %3 = tpu.matmul %1, %2, %cst {dimension_numbers = #tpu.dot_dimension_numbers<[1], [1], [0], [0], [0, 0, 1, 0], [], []>} : vector<2x4096xbf16>, vector<10x4096xbf16>, vector<2x10xf32> -> vector<2x10xf32>
    %c0_3 = arith.constant 0 : index
    %c0_4 = arith.constant 0 : index
    %4 = vector.load %arg3[%c0_3, %c0_4] : memref<1x10xf32, #tpu.memory_space<vmem>>, vector<1x10xf32>
    %5 = vector.broadcast %4 : vector<1x10xf32> to vector<2x10xf32>
    %6 = arith.addf %3, %5 : vector<2x10xf32>
    %c0_5 = arith.constant 0 : index
    %c0_6 = arith.constant 0 : index
    %7 = vector.load %arg4[%c0_5, %c0_6] : memref<2x10xf32, #tpu.memory_space<vmem>>, vector<2x10xf32>
    tpu.vector_store %arg4[%c0_5, %c0_6], %6 {strides = array<i32>} : memref<2x10xf32, #tpu.memory_space<vmem>>, vector<2x10xf32>,
    return
  }
  func.func @transform_0(%arg0: i32) -> (i32, i32) {
    %c0_i32 = arith.constant 0 : i32
    %c0_i32_0 = arith.constant 0 : i32
    return %arg0, %c0_i32 : i32, i32
  }
  func.func @transform_1(%arg0: i32) -> (i32, i32) {
    %c0_i32 = arith.constant 0 : i32
    %c0_i32_0 = arith.constant 0 : i32
    %c0_i32_1 = arith.constant 0 : i32
    return %c0_i32, %c0_i32_0 : i32, i32
  }
  func.func @transform_2(%arg0: i32) -> (i32, i32) {
    %c0_i32 = arith.constant 0 : i32
    %c0_i32_0 = arith.constant 0 : i32
    %c0_i32_1 = arith.constant 0 : i32
    return %c0_i32, %c0_i32_0 : i32, i32
  }
  func.func @transform_3(%arg0: i32) -> (i32, i32) {
    %c0_i32 = arith.constant 0 : i32
    %c0_i32_0 = arith.constant 0 : i32
    return %arg0, %c0_i32 : i32, i32
  }
}

</mosaic_0001>

<llo_original>
// kernel: prediction_layer.1
$region0: #{prediction_layer.1}
  #allocation0 [shape = 'u32[]', space=smem, size = 0x4, offset = 0x4, fixed_abs, tag = 'smem constant byte address 0x4 - core index']
  #allocation1 [shape = 'u32[72,128]{1,0:T(1,128)}', space=vmem, size = 0x9000, scoped, tag = 'internal scratch']
  %s0 = inlined_call_operand.vmem [shape: f32[2,12288], index: 0, kind: input, shape index: {}]
  %s1 = inlined_call_operand.vmem [shape: bf16[10,4096], index: 1, kind: input, shape index: {}]
  %s2 = inlined_call_operand.vmem [shape: f32[1,10], index: 2, kind: input, shape index: {}]
  %s3 = inlined_call_operand.hbm [shape: f32[2,10], index: 3, kind: output, shape index: {}]
  %s4 = sld [smem:[#allocation0]]
  $region22: #{prediction_layer.1} parent=0
    _
  %s6 = ssub.s32 1, %s4
  %s7 = scalar_select 0, %s6, %s4
  $region1: #{prediction_layer.1} parent=0
    #allocation2 [shape = 'u8[1024]{0}', space=vmem, size = 0x400, scoped, tag = 'output window, operand 0, single buffered']
    #allocation3 [shape = 's32[1]{0}', space=sflag, size = 0x4, scoped, tag = 'scoped memory for prediction_layer.1']
    %8 = vsyncpa [#allocation3], 0
    // Predicated region
    $region2: #{prediction_layer.1} parent=1 // pred_check
      _
    $region3: #{prediction_layer.1} parent=1 // pred_check_branch
      %10 = sbr.rel (0) target = $region5
    $region4: #{prediction_layer.1} parent=1 // pred_region
      _
    $region5: #{prediction_layer.1} parent=1 // pred_fallthru
      _
    // Predicated region
    $region6: #{prediction_layer.1} parent=1 // pred_check
      _
    $region7: #{prediction_layer.1} parent=1 // pred_check_branch
      %12 = sbr.rel (0) target = $region9
    $region8: #{prediction_layer.1} parent=1 // pred_region
      _
    $region9: #{prediction_layer.1} parent=1 // pred_fallthru
      _
    // Predicated region
    $region10: #{prediction_layer.1} parent=1 // pred_check
      _
    $region11: #{prediction_layer.1} parent=1 // pred_check_branch
      %14 = sbr.rel (0) target = $region13
    $region12: #{prediction_layer.1} parent=1 // pred_region
      _
    $region13: #{prediction_layer.1} parent=1 // pred_fallthru
      _
    %v16 = vld [vmem:[%s0] sm:$0xff]
    %v17 = vld [vmem:[%s0 + $0x8] sm:$0xff]
    %v18 = vld [vmem:[%s0 + $0x10] sm:$0xff]
    %v19 = vld [vmem:[%s0 + $0x18] sm:$0xff]
    %v20 = vld [vmem:[%s0 + $0x20] sm:$0xff]
    %v21 = vld [vmem:[%s0 + $0x28] sm:$0xff]
    %v22 = vld [vmem:[%s0 + $0x30] sm:$0xff]
    %v23 = vld [vmem:[%s0 + $0x38] sm:$0xff]
    %32 = vst [vmem:[#allocation1] ss:$4 sm:$0xff] %v16
    %s33 = scalar_lea.vmem [#allocation1], 32
    %34 = vst [vmem:[%s33] ss:$4 sm:$0xff] %v17
    %v35 = vld.sshfl [vmem:[#allocation1] sm:$0xff pattern:$0x73625140]
    %v36 = vld.sshfl [vmem:[#allocation1 + $0x8] sm:$0xff pattern:$0x73625140]
    %v37 = vld.sshfl [vmem:[#allocation1 + $0x10] sm:$0xff pattern:$0x73625140]
    %v38 = vld.sshfl [vmem:[#allocation1 + $0x18] sm:$0xff pattern:$0x73625140]
    %v39 = vld.sshfl [vmem:[#allocation1 + $0x20] sm:$0xff pattern:$0x73625140]
    %v40 = vld.sshfl [vmem:[#allocation1 + $0x28] sm:$0xff pattern:$0x73625140]
    %v41 = vld.sshfl [vmem:[#allocation1 + $0x30] sm:$0xff pattern:$0x73625140]
    %v42 = vld.sshfl [vmem:[#allocation1 + $0x38] sm:$0xff pattern:$0x73625140]
    %43 = vst [vmem:[#allocation1] ss:$4 sm:$0xff] %v18
    %44 = vst [vmem:[%s33] ss:$4 sm:$0xff] %v19
    %v45 = vld.sshfl [vmem:[#allocation1] sm:$0xff pattern:$0x73625140]
    %v46 = vld.sshfl [vmem:[#allocation1 + $0x8] sm:$0xff pattern:$0x73625140]
    %v47 = vld.sshfl [vmem:[#allocation1 + $0x10] sm:$0xff pattern:$0x73625140]
    %v48 = vld.sshfl [vmem:[#allocation1 + $0x18] sm:$0xff pattern:$0x73625140]
    %v49 = vld.sshfl [vmem:[#allocation1 + $0x20] sm:$0xff pattern:$0x73625140]
    %v50 = vld.sshfl [vmem:[#allocation1 + $0x28] sm:$0xff pattern:$0x73625140]
    %v51 = vld.sshfl [vmem:[#allocation1 + $0x30] sm:$0xff pattern:$0x73625140]
    %v52 = vld.sshfl [vmem:[#allocation1 + $0x38] sm:$0xff pattern:$0x73625140]
    %53 = vst [vmem:[#allocation1] ss:$4 sm:$0xff] %v20
    %54 = vst [vmem:[%s33] ss:$4 sm:$0xff] %v21
    %v55 = vld.sshfl [vmem:[#allocation1] sm:$0xff pattern:$0x73625140]
    %v56 = vld.sshfl [vmem:[#allocation1 + $0x8] sm:$0xff pattern:$0x73625140]
    %v57 = vld.sshfl [vmem:[#allocation1 + $0x10] sm:$0xff pattern:$0x73625140]
    %v58 = vld.sshfl [vmem:[#allocation1 + $0x18] sm:$0xff pattern:$0x73625140]
    %v59 = vld.sshfl [vmem:[#allocation1 + $0x20] sm:$0xff pattern:$0x73625140]
    %v60 = vld.sshfl [vmem:[#allocation1 + $0x28] sm:$0xff pattern:$0x73625140]
    %v61 = vld.sshfl [vmem:[#allocation1 + $0x30] sm:$0xff pattern:$0x73625140]
    %v62 = vld.sshfl [vmem:[#allocation1 + $0x38] sm:$0xff pattern:$0x73625140]
    %63 = vst [vmem:[#allocation1] ss:$4 sm:$0xff] %v22
    %64 = vst [vmem:[%s33] ss:$4 sm:$0xff] %v23
    %v65 = vld.sshfl [vmem:[#allocation1] sm:$0xff pattern:$0x73625140]
    %v66 = vld.sshfl [vmem:[#allocation1 + $0x8] sm:$0xff pattern:$0x73625140]
    %v67 = vld.sshfl [vmem:[#allocation1 + $0x10] sm:$0xff pattern:$0x73625140]
    %v68 = vld.sshfl [vmem:[#allocation1 + $0x18] sm:$0xff pattern:$0x73625140]
    %v69 = vld.sshfl [vmem:[#allocation1 + $0x20] sm:$0xff pattern:$0x73625140]
    %v70 = vld.sshfl [vmem:[#allocation1 + $0x28] sm:$0xff pattern:$0x73625140]
    %v71 = vld.sshfl [vmem:[#allocation1 + $0x30] sm:$0xff pattern:$0x73625140]
    %v72 = vld.sshfl [vmem:[#allocation1 + $0x38] sm:$0xff pattern:$0x73625140]
    %v105 = vpack.c.bf16 %v35, %v35
    %v106 = vpack.c.bf16 %v36, %v36
    %v107 = vpack.c.bf16 %v37, %v37
    %v108 = vpack.c.bf16 %v38, %v38
    %v109 = vpack.c.bf16 %v39, %v39
    %v110 = vpack.c.bf16 %v40, %v40
    %v111 = vpack.c.bf16 %v41, %v41
    %v112 = vpack.c.bf16 %v42, %v42
    %v113 = vpack.c.bf16 %v45, %v45
    %v114 = vpack.c.bf16 %v46, %v46
    %v115 = vpack.c.bf16 %v47, %v47
    %v116 = vpack.c.bf16 %v48, %v48
    %v117 = vpack.c.bf16 %v49, %v49
    %v118 = vpack.c.bf16 %v50, %v50
    %v119 = vpack.c.bf16 %v51, %v51
    %v120 = vpack.c.bf16 %v52, %v52
    %v121 = vpack.c.bf16 %v55, %v55
    %v122 = vpack.c.bf16 %v56, %v56
    %v123 = vpack.c.bf16 %v57, %v57
    %v124 = vpack.c.bf16 %v58, %v58
    %v125 = vpack.c.bf16 %v59, %v59
    %v126 = vpack.c.bf16 %v60, %v60
    %v127 = vpack.c.bf16 %v61, %v61
    %v128 = vpack.c.bf16 %v62, %v62
    %v129 = vpack.c.bf16 %v65, %v65
    %v130 = vpack.c.bf16 %v66, %v66
    %v131 = vpack.c.bf16 %v67, %v67
    %v132 = vpack.c.bf16 %v68, %v68
    %v133 = vpack.c.bf16 %v69, %v69
    %v134 = vpack.c.bf16 %v70, %v70
    %v135 = vpack.c.bf16 %v71, %v71
    %v136 = vpack.c.bf16 %v72, %v72
    %v137 = vld [vmem:[%s1] sm:$0xff]
    %v138 = vld [vmem:[%s1 + $0x8] sm:$0xff]
    %v139 = vld [vmem:[%s1 + $0x10] sm:$0xff]
    %v140 = vld [vmem:[%s1 + $0x18] sm:$0xff]
    %v141 = vld [vmem:[%s1 + $0x20] sm:$0xff]
    %v142 = vld [vmem:[%s1 + $0x28] sm:$0xff]
    %v143 = vld [vmem:[%s1 + $0x30] sm:$0xff]
    %v144 = vld [vmem:[%s1 + $0x38] sm:$0xff]
    %v145 = vld [vmem:[%s1 + $0x40] sm:$0xff]
    %v146 = vld [vmem:[%s1 + $0x48] sm:$0xff]
    %v147 = vld [vmem:[%s1 + $0x50] sm:$0xff]
    %v148 = vld [vmem:[%s1 + $0x58] sm:$0xff]
    %v149 = vld [vmem:[%s1 + $0x60] sm:$0xff]
    %v150 = vld [vmem:[%s1 + $0x68] sm:$0xff]
    %v151 = vld [vmem:[%s1 + $0x70] sm:$0xff]
    %v152 = vld [vmem:[%s1 + $0x78] sm:$0xff]
    %v153 = vld [vmem:[%s1 + $0x80] sm:$0x11]
    %v154 = vld [vmem:[%s1 + $0x88] sm:$0x11]
    %v155 = vld [vmem:[%s1 + $0x90] sm:$0x11]
    %v156 = vld [vmem:[%s1 + $0x98] sm:$0x11]
    %v157 = vld [vmem:[%s1 + $0xa0] sm:$0x11]
    %v158 = vld [vmem:[%s1 + $0xa8] sm:$0x11]
    %v159 = vld [vmem:[%s1 + $0xb0] sm:$0x11]
    %v160 = vld [vmem:[%s1 + $0xb8] sm:$0x11]
    %v161 = vld [vmem:[%s1 + $0xc0] sm:$0x11]
    %v162 = vld [vmem:[%s1 + $0xc8] sm:$0x11]
    %v163 = vld [vmem:[%s1 + $0xd0] sm:$0x11]
    %v164 = vld [vmem:[%s1 + $0xd8] sm:$0x11]
    %v165 = vld [vmem:[%s1 + $0xe0] sm:$0x11]
    %v166 = vld [vmem:[%s1 + $0xe8] sm:$0x11]
    %v167 = vld [vmem:[%s1 + $0xf0] sm:$0x11]
    %v168 = vld [vmem:[%s1 + $0xf8] sm:$0x11]
    %v169 = vld [vmem:[%s2] sm:$0x1]
    %v171 = vperm.slane %v169, 0
    %v205 = vunpack.c.l.b16 %v137
    %v206 = vunpack.c.h.b16 %v137
    %v207 = vunpack.c.l.b16 %v138
    %v208 = vunpack.c.h.b16 %v138
    %v209 = vunpack.c.l.b16 %v139
    %v210 = vunpack.c.h.b16 %v139
    %v211 = vunpack.c.l.b16 %v140
    %v212 = vunpack.c.h.b16 %v140
    %v213 = vunpack.c.l.b16 %v141
    %v214 = vunpack.c.h.b16 %v141
    %v215 = vunpack.c.l.b16 %v142
    %v216 = vunpack.c.h.b16 %v142
    %v217 = vunpack.c.l.b16 %v143
    %v218 = vunpack.c.h.b16 %v143
    %v219 = vunpack.c.l.b16 %v144
    %v220 = vunpack.c.h.b16 %v144
    %v221 = vunpack.c.l.b16 %v145
    %v222 = vunpack.c.h.b16 %v145
    %v223 = vunpack.c.l.b16 %v146
    %v224 = vunpack.c.h.b16 %v146
    %v225 = vunpack.c.l.b16 %v147
    %v226 = vunpack.c.h.b16 %v147
    %v227 = vunpack.c.l.b16 %v148
    %v228 = vunpack.c.h.b16 %v148
    %v229 = vunpack.c.l.b16 %v149
    %v230 = vunpack.c.h.b16 %v149
    %v231 = vunpack.c.l.b16 %v150
    %v232 = vunpack.c.h.b16 %v150
    %v233 = vunpack.c.l.b16 %v151
    %v234 = vunpack.c.h.b16 %v151
    %v235 = vunpack.c.l.b16 %v152
    %v236 = vunpack.c.h.b16 %v152
    %v237 = vunpack.c.l.b16 %v153
    %v238 = vunpack.c.h.b16 %v153
    %v239 = vunpack.c.l.b16 %v154
    %v240 = vunpack.c.h.b16 %v154
    %v241 = vunpack.c.l.b16 %v155
    %v242 = vunpack.c.h.b16 %v155
    %v243 = vunpack.c.l.b16 %v156
    %v244 = vunpack.c.h.b16 %v156
    %v245 = vunpack.c.l.b16 %v157
    %v246 = vunpack.c.h.b16 %v157
    %v247 = vunpack.c.l.b16 %v158
    %v248 = vunpack.c.h.b16 %v158
    %v249 = vunpack.c.l.b16 %v159
    %v250 = vunpack.c.h.b16 %v159
    %v251 = vunpack.c.l.b16 %v160
    %v252 = vunpack.c.h.b16 %v160
    %v253 = vunpack.c.l.b16 %v161
    %v254 = vunpack.c.h.b16 %v161
    %v255 = vunpack.c.l.b16 %v162
    %v256 = vunpack.c.h.b16 %v162
    %v257 = vunpack.c.l.b16 %v163
    %v258 = vunpack.c.h.b16 %v163
    %v259 = vunpack.c.l.b16 %v164
    %v260 = vunpack.c.h.b16 %v164
    %v261 = vunpack.c.l.b16 %v165
    %v262 = vunpack.c.h.b16 %v165
    %v263 = vunpack.c.l.b16 %v166
    %v264 = vunpack.c.h.b16 %v166
    %v265 = vunpack.c.l.b16 %v167
    %v266 = vunpack.c.h.b16 %v167
    %v267 = vunpack.c.l.b16 %v168
    %v268 = vunpack.c.h.b16 %v168
    %v269 = vpack.c.b16 %v237, %v205
    %v270 = vpack.c.b16 %v238, %v206
    %v271 = vpack.c.b16 %v239, %v207
    %v272 = vpack.c.b16 %v240, %v208
    %v273 = vpack.c.b16 %v241, %v209
    %v274 = vpack.c.b16 %v242, %v210
    %v275 = vpack.c.b16 %v243, %v211
    %v276 = vpack.c.b16 %v244, %v212
    %v277 = vpack.c.b16 %v245, %v213
    %v278 = vpack.c.b16 %v246, %v214
    %v279 = vpack.c.b16 %v247, %v215
    %v280 = vpack.c.b16 %v248, %v216
    %v281 = vpack.c.b16 %v249, %v217
    %v282 = vpack.c.b16 %v250, %v218
    %v283 = vpack.c.b16 %v251, %v219
    %v284 = vpack.c.b16 %v252, %v220
    %v285 = vpack.c.b16 %v253, %v221
    %v286 = vpack.c.b16 %v254, %v222
    %v287 = vpack.c.b16 %v255, %v223
    %v288 = vpack.c.b16 %v256, %v224
    %v289 = vpack.c.b16 %v257, %v225
    %v290 = vpack.c.b16 %v258, %v226
    %v291 = vpack.c.b16 %v259, %v227
    %v292 = vpack.c.b16 %v260, %v228
    %v293 = vpack.c.b16 %v261, %v229
    %v294 = vpack.c.b16 %v262, %v230
    %v295 = vpack.c.b16 %v263, %v231
    %v296 = vpack.c.b16 %v264, %v232
    %v297 = vpack.c.b16 %v265, %v233
    %v298 = vpack.c.b16 %v266, %v234
    %v299 = vpack.c.b16 %v267, %v235
    %v300 = vpack.c.b16 %v268, %v236
    %333 = vmatpush.bf16.xpose.msra.mxu0 0
    %334 = vmatpush.bf16.xpose.msra.mxu0 0
    %335 = vmatpush.bf16.xpose.msra.mxu0 0
    %336 = vmatpush.bf16.xpose.msra.mxu0 0
    %337 = vmatpush.bf16.xpose.msra.mxu0 0
    %338 = vmatpush.bf16.xpose.msra.mxu0 0
    %339 = vmatpush.bf16.xpose.msra.mxu0 0
    %340 = vmatpush.bf16.xpose.msra.mxu0 %v269
    %341 = vmatmul.bf16.gmra.mxu0 %v105
    %v342 = vpop.f32.mrf.mxu0
    %v343 = vadd.f32 %v171, %v342
    %v344 = vpop.f32.mrf.mxu0
    %345 = vdwg.mxu0
    %346 = vmatpush.bf16.xpose.msra.mxu0 0
    %347 = vmatpush.bf16.xpose.msra.mxu0 0
    %348 = vmatpush.bf16.xpose.msra.mxu0 0
    %349 = vmatpush.bf16.xpose.msra.mxu0 0
    %350 = vmatpush.bf16.xpose.msra.mxu0 0
    %351 = vmatpush.bf16.xpose.msra.mxu0 0
    %352 = vmatpush.bf16.xpose.msra.mxu0 0
    %353 = vmatpush.bf16.xpose.msra.mxu0 %v270
    %354 = vmatmul.bf16.gmra.mxu0 %v106
    %v355 = vpop.f32.mrf.mxu0
    %v356 = vadd.f32 %v343, %v355
    %v357 = vpop.f32.mrf.mxu0
    %358 = vdwg.mxu0
    %359 = vmatpush.bf16.xpose.msra.mxu0 0
    %360 = vmatpush.bf16.xpose.msra.mxu0 0
    %361 = vmatpush.bf16.xpose.msra.mxu0 0
    %362 = vmatpush.bf16.xpose.msra.mxu0 0
    %363 = vmatpush.bf16.xpose.msra.mxu0 0
    %364 = vmatpush.bf16.xpose.msra.mxu0 0
    %365 = vmatpush.bf16.xpose.msra.mxu0 0
    %366 = vmatpush.bf16.xpose.msra.mxu0 %v271
    %367 = vmatmul.bf16.gmra.mxu0 %v107
    %v368 = vpop.f32.mrf.mxu0
    %v369 = vadd.f32 %v356, %v368
    %v370 = vpop.f32.mrf.mxu0
    %371 = vdwg.mxu0
    %372 = vmatpush.bf16.xpose.msra.mxu0 0
    %373 = vmatpush.bf16.xpose.msra.mxu0 0
    %374 = vmatpush.bf16.xpose.msra.mxu0 0
    %375 = vmatpush.bf16.xpose.msra.mxu0 0
    %376 = vmatpush.bf16.xpose.msra.mxu0 0
    %377 = vmatpush.bf16.xpose.msra.mxu0 0
    %378 = vmatpush.bf16.xpose.msra.mxu0 0
    %379 = vmatpush.bf16.xpose.msra.mxu0 %v272
    %380 = vmatmul.bf16.gmra.mxu0 %v108
    %v381 = vpop.f32.mrf.mxu0
    %v382 = vadd.f32 %v369, %v381
    %v383 = vpop.f32.mrf.mxu0
    %384 = vdwg.mxu0
    %385 = vmatpush.bf16.xpose.msra.mxu0 0
    %386 = vmatpush.bf16.xpose.msra.mxu0 0
    %387 = vmatpush.bf16.xpose.msra.mxu0 0
    %388 = vmatpush.bf16.xpose.msra.mxu0 0
    %389 = vmatpush.bf16.xpose.msra.mxu0 0
    %390 = vmatpush.bf16.xpose.msra.mxu0 0
    %391 = vmatpush.bf16.xpose.msra.mxu0 0
    %392 = vmatpush.bf16.xpose.msra.mxu0 %v273
    %393 = vmatmul.bf16.gmra.mxu0 %v109
    %v394 = vpop.f32.mrf.mxu0
    %v395 = vadd.f32 %v382, %v394
    %v396 = vpop.f32.mrf.mxu0
    %397 = vdwg.mxu0
    %398 = vmatpush.bf16.xpose.msra.mxu0 0
    %399 = vmatpush.bf16.xpose.msra.mxu0 0
    %400 = vmatpush.bf16.xpose.msra.mxu0 0
    %401 = vmatpush.bf16.xpose.msra.mxu0 0
    %402 = vmatpush.bf16.xpose.msra.mxu0 0
    %403 = vmatpush.bf16.xpose.msra.mxu0 0
    %404 = vmatpush.bf16.xpose.msra.mxu0 0
    %405 = vmatpush.bf16.xpose.msra.mxu0 %v274
    %406 = vmatmul.bf16.gmra.mxu0 %v110
    %v407 = vpop.f32.mrf.mxu0
    %v408 = vadd.f32 %v395, %v407
    %v409 = vpop.f32.mrf.mxu0
    %410 = vdwg.mxu0
    %411 = vmatpush.bf16.xpose.msra.mxu0 0
    %412 = vmatpush.bf16.xpose.msra.mxu0 0
    %413 = vmatpush.bf16.xpose.msra.mxu0 0
    %414 = vmatpush.bf16.xpose.msra.mxu0 0
    %415 = vmatpush.bf16.xpose.msra.mxu0 0
    %416 = vmatpush.bf16.xpose.msra.mxu0 0
    %417 = vmatpush.bf16.xpose.msra.mxu0 0
    %418 = vmatpush.bf16.xpose.msra.mxu0 %v275
    %419 = vmatmul.bf16.gmra.mxu0 %v111
    %v420 = vpop.f32.mrf.mxu0
    %v421 = vadd.f32 %v408, %v420
    %v422 = vpop.f32.mrf.mxu0
    %423 = vdwg.mxu0
    %424 = vmatpush.bf16.xpose.msra.mxu0 0
    %425 = vmatpush.bf16.xpose.msra.mxu0 0
    %426 = vmatpush.bf16.xpose.msra.mxu0 0
    %427 = vmatpush.bf16.xpose.msra.mxu0 0
    %428 = vmatpush.bf16.xpose.msra.mxu0 0
    %429 = vmatpush.bf16.xpose.msra.mxu0 0
    %430 = vmatpush.bf16.xpose.msra.mxu0 0
    %431 = vmatpush.bf16.xpose.msra.mxu0 %v276
    %432 = vmatmul.bf16.gmra.mxu0 %v112
    %v433 = vpop.f32.mrf.mxu0
    %v434 = vadd.f32 %v421, %v433
    %v435 = vpop.f32.mrf.mxu0
    %436 = vdwg.mxu0
    %437 = vmatpush.bf16.xpose.msra.mxu0 0
    %438 = vmatpush.bf16.xpose.msra.mxu0 0
    %439 = vmatpush.bf16.xpose.msra.mxu0 0
    %440 = vmatpush.bf16.xpose.msra.mxu0 0
    %441 = vmatpush.bf16.xpose.msra.mxu0 0
    %442 = vmatpush.bf16.xpose.msra.mxu0 0
    %443 = vmatpush.bf16.xpose.msra.mxu0 0
    %444 = vmatpush.bf16.xpose.msra.mxu0 %v277
    %445 = vmatmul.bf16.gmra.mxu0 %v113
    %v446 = vpop.f32.mrf.mxu0
    %v447 = vadd.f32 %v434, %v446
    %v448 = vpop.f32.mrf.mxu0
    %449 = vdwg.mxu0
    %450 = vmatpush.bf16.xpose.msra.mxu0 0
    %451 = vmatpush.bf16.xpose.msra.mxu0 0
    %452 = vmatpush.bf16.xpose.msra.mxu0 0
    %453 = vmatpush.bf16.xpose.msra.mxu0 0
    %454 = vmatpush.bf16.xpose.msra.mxu0 0
    %455 = vmatpush.bf16.xpose.msra.mxu0 0
    %456 = vmatpush.bf16.xpose.msra.mxu0 0
    %457 = vmatpush.bf16.xpose.msra.mxu0 %v278
    %458 = vmatmul.bf16.gmra.mxu0 %v114
    %v459 = vpop.f32.mrf.mxu0
    %v460 = vadd.f32 %v447, %v459
    %v461 = vpop.f32.mrf.mxu0
    %462 = vdwg.mxu0
    %463 = vmatpush.bf16.xpose.msra.mxu0 0
    %464 = vmatpush.bf16.xpose.msra.mxu0 0
    %465 = vmatpush.bf16.xpose.msra.mxu0 0
    %466 = vmatpush.bf16.xpose.msra.mxu0 0
    %467 = vmatpush.bf16.xpose.msra.mxu0 0
    %468 = vmatpush.bf16.xpose.msra.mxu0 0
    %469 = vmatpush.bf16.xpose.msra.mxu0 0
    %470 = vmatpush.bf16.xpose.msra.mxu0 %v279
    %471 = vmatmul.bf16.gmra.mxu0 %v115
    %v472 = vpop.f32.mrf.mxu0
    %v473 = vadd.f32 %v460, %v472
    %v474 = vpop.f32.mrf.mxu0
    %475 = vdwg.mxu0
    %476 = vmatpush.bf16.xpose.msra.mxu0 0
    %477 = vmatpush.bf16.xpose.msra.mxu0 0
    %478 = vmatpush.bf16.xpose.msra.mxu0 0
    %479 = vmatpush.bf16.xpose.msra.mxu0 0
    %480 = vmatpush.bf16.xpose.msra.mxu0 0
    %481 = vmatpush.bf16.xpose.msra.mxu0 0
    %482 = vmatpush.bf16.xpose.msra.mxu0 0
    %483 = vmatpush.bf16.xpose.msra.mxu0 %v280
    %484 = vmatmul.bf16.gmra.mxu0 %v116
    %v485 = vpop.f32.mrf.mxu0
    %v486 = vadd.f32 %v473, %v485
    %v487 = vpop.f32.mrf.mxu0
    %488 = vdwg.mxu0
    %489 = vmatpush.bf16.xpose.msra.mxu0 0
    %490 = vmatpush.bf16.xpose.msra.mxu0 0
    %491 = vmatpush.bf16.xpose.msra.mxu0 0
    %492 = vmatpush.bf16.xpose.msra.mxu0 0
    %493 = vmatpush.bf16.xpose.msra.mxu0 0
    %494 = vmatpush.bf16.xpose.msra.mxu0 0
    %495 = vmatpush.bf16.xpose.msra.mxu0 0
    %496 = vmatpush.bf16.xpose.msra.mxu0 %v281
    %497 = vmatmul.bf16.gmra.mxu0 %v117
    %v498 = vpop.f32.mrf.mxu0
    %v499 = vadd.f32 %v486, %v498
    %v500 = vpop.f32.mrf.mxu0
    %501 = vdwg.mxu0
    %502 = vmatpush.bf16.xpose.msra.mxu0 0
    %503 = vmatpush.bf16.xpose.msra.mxu0 0
    %504 = vmatpush.bf16.xpose.msra.mxu0 0
    %505 = vmatpush.bf16.xpose.msra.mxu0 0
    %506 = vmatpush.bf16.xpose.msra.mxu0 0
    %507 = vmatpush.bf16.xpose.msra.mxu0 0
    %508 = vmatpush.bf16.xpose.msra.mxu0 0
    %509 = vmatpush.bf16.xpose.msra.mxu0 %v282
    %510 = vmatmul.bf16.gmra.mxu0 %v118
    %v511 = vpop.f32.mrf.mxu0
    %v512 = vadd.f32 %v499, %v511
    %v513 = vpop.f32.mrf.mxu0
    %514 = vdwg.mxu0
    %515 = vmatpush.bf16.xpose.msra.mxu0 0
    %516 = vmatpush.bf16.xpose.msra.mxu0 0
    %517 = vmatpush.bf16.xpose.msra.mxu0 0
    %518 = vmatpush.bf16.xpose.msra.mxu0 0
    %519 = vmatpush.bf16.xpose.msra.mxu0 0
    %520 = vmatpush.bf16.xpose.msra.mxu0 0
    %521 = vmatpush.bf16.xpose.msra.mxu0 0
    %522 = vmatpush.bf16.xpose.msra.mxu0 %v283
    %523 = vmatmul.bf16.gmra.mxu0 %v119
    %v524 = vpop.f32.mrf.mxu0
    %v525 = vadd.f32 %v512, %v524
    %v526 = vpop.f32.mrf.mxu0
    %527 = vdwg.mxu0
    %528 = vmatpush.bf16.xpose.msra.mxu0 0
    %529 = vmatpush.bf16.xpose.msra.mxu0 0
    %530 = vmatpush.bf16.xpose.msra.mxu0 0
    %531 = vmatpush.bf16.xpose.msra.mxu0 0
    %532 = vmatpush.bf16.xpose.msra.mxu0 0
    %533 = vmatpush.bf16.xpose.msra.mxu0 0
    %534 = vmatpush.bf16.xpose.msra.mxu0 0
    %535 = vmatpush.bf16.xpose.msra.mxu0 %v284
    %536 = vmatmul.bf16.gmra.mxu0 %v120
    %v537 = vpop.f32.mrf.mxu0
    %v538 = vadd.f32 %v525, %v537
    %v539 = vpop.f32.mrf.mxu0
    %540 = vdwg.mxu0
    %541 = vmatpush.bf16.xpose.msra.mxu0 0
    %542 = vmatpush.bf16.xpose.msra.mxu0 0
    %543 = vmatpush.bf16.xpose.msra.mxu0 0
    %544 = vmatpush.bf16.xpose.msra.mxu0 0
    %545 = vmatpush.bf16.xpose.msra.mxu0 0
    %546 = vmatpush.bf16.xpose.msra.mxu0 0
    %547 = vmatpush.bf16.xpose.msra.mxu0 0
    %548 = vmatpush.bf16.xpose.msra.mxu0 %v285
    %549 = vmatmul.bf16.gmra.mxu0 %v121
    %v550 = vpop.f32.mrf.mxu0
    %v551 = vadd.f32 %v538, %v550
    %v552 = vpop.f32.mrf.mxu0
    %553 = vdwg.mxu0
    %554 = vmatpush.bf16.xpose.msra.mxu0 0
    %555 = vmatpush.bf16.xpose.msra.mxu0 0
    %556 = vmatpush.bf16.xpose.msra.mxu0 0
    %557 = vmatpush.bf16.xpose.msra.mxu0 0
    %558 = vmatpush.bf16.xpose.msra.mxu0 0
    %559 = vmatpush.bf16.xpose.msra.mxu0 0
    %560 = vmatpush.bf16.xpose.msra.mxu0 0
    %561 = vmatpush.bf16.xpose.msra.mxu0 %v286
    %562 = vmatmul.bf16.gmra.mxu0 %v122
    %v563 = vpop.f32.mrf.mxu0
    %v564 = vadd.f32 %v551, %v563
    %v565 = vpop.f32.mrf.mxu0
    %566 = vdwg.mxu0
    %567 = vmatpush.bf16.xpose.msra.mxu0 0
    %568 = vmatpush.bf16.xpose.msra.mxu0 0
    %569 = vmatpush.bf16.xpose.msra.mxu0 0
    %570 = vmatpush.bf16.xpose.msra.mxu0 0
    %571 = vmatpush.bf16.xpose.msra.mxu0 0
    %572 = vmatpush.bf16.xpose.msra.mxu0 0
    %573 = vmatpush.bf16.xpose.msra.mxu0 0
    %574 = vmatpush.bf16.xpose.msra.mxu0 %v287
    %575 = vmatmul.bf16.gmra.mxu0 %v123
    %v576 = vpop.f32.mrf.mxu0
    %v577 = vadd.f32 %v564, %v576
    %v578 = vpop.f32.mrf.mxu0
    %579 = vdwg.mxu0
    %580 = vmatpush.bf16.xpose.msra.mxu0 0
    %581 = vmatpush.bf16.xpose.msra.mxu0 0
    %582 = vmatpush.bf16.xpose.msra.mxu0 0
    %583 = vmatpush.bf16.xpose.msra.mxu0 0
    %584 = vmatpush.bf16.xpose.msra.mxu0 0
    %585 = vmatpush.bf16.xpose.msra.mxu0 0
    %586 = vmatpush.bf16.xpose.msra.mxu0 0
    %587 = vmatpush.bf16.xpose.msra.mxu0 %v288
    %588 = vmatmul.bf16.gmra.mxu0 %v124
    %v589 = vpop.f32.mrf.mxu0
    %v590 = vadd.f32 %v577, %v589
    %v591 = vpop.f32.mrf.mxu0
    %592 = vdwg.mxu0
    %593 = vmatpush.bf16.xpose.msra.mxu0 0
    %594 = vmatpush.bf16.xpose.msra.mxu0 0
    %595 = vmatpush.bf16.xpose.msra.mxu0 0
    %596 = vmatpush.bf16.xpose.msra.mxu0 0
    %597 = vmatpush.bf16.xpose.msra.mxu0 0
    %598 = vmatpush.bf16.xpose.msra.mxu0 0
    %599 = vmatpush.bf16.xpose.msra.mxu0 0
    %600 = vmatpush.bf16.xpose.msra.mxu0 %v289
    %601 = vmatmul.bf16.gmra.mxu0 %v125
    %v602 = vpop.f32.mrf.mxu0
    %v603 = vadd.f32 %v590, %v602
    %v604 = vpop.f32.mrf.mxu0
    %605 = vdwg.mxu0
    %606 = vmatpush.bf16.xpose.msra.mxu0 0
    %607 = vmatpush.bf16.xpose.msra.mxu0 0
    %608 = vmatpush.bf16.xpose.msra.mxu0 0
    %609 = vmatpush.bf16.xpose.msra.mxu0 0
    %610 = vmatpush.bf16.xpose.msra.mxu0 0
    %611 = vmatpush.bf16.xpose.msra.mxu0 0
    %612 = vmatpush.bf16.xpose.msra.mxu0 0
    %613 = vmatpush.bf16.xpose.msra.mxu0 %v290
    %614 = vmatmul.bf16.gmra.mxu0 %v126
    %v615 = vpop.f32.mrf.mxu0
    %v616 = vadd.f32 %v603, %v615
    %v617 = vpop.f32.mrf.mxu0
    %618 = vdwg.mxu0
    %619 = vmatpush.bf16.xpose.msra.mxu0 0
    %620 = vmatpush.bf16.xpose.msra.mxu0 0
    %621 = vmatpush.bf16.xpose.msra.mxu0 0
    %622 = vmatpush.bf16.xpose.msra.mxu0 0
    %623 = vmatpush.bf16.xpose.msra.mxu0 0
    %624 = vmatpush.bf16.xpose.msra.mxu0 0
    %625 = vmatpush.bf16.xpose.msra.mxu0 0
    %626 = vmatpush.bf16.xpose.msra.mxu0 %v291
    %627 = vmatmul.bf16.gmra.mxu0 %v127
    %v628 = vpop.f32.mrf.mxu0
    %v629 = vadd.f32 %v616, %v628
    %v630 = vpop.f32.mrf.mxu0
    %631 = vdwg.mxu0
    %632 = vmatpush.bf16.xpose.msra.mxu0 0
    %633 = vmatpush.bf16.xpose.msra.mxu0 0
    %634 = vmatpush.bf16.xpose.msra.mxu0 0
    %635 = vmatpush.bf16.xpose.msra.mxu0 0
    %636 = vmatpush.bf16.xpose.msra.mxu0 0
    %637 = vmatpush.bf16.xpose.msra.mxu0 0
    %638 = vmatpush.bf16.xpose.msra.mxu0 0
    %639 = vmatpush.bf16.xpose.msra.mxu0 %v292
    %640 = vmatmul.bf16.gmra.mxu0 %v128
    %v641 = vpop.f32.mrf.mxu0
    %v642 = vadd.f32 %v629, %v641
    %v643 = vpop.f32.mrf.mxu0
    %644 = vdwg.mxu0
    %645 = vmatpush.bf16.xpose.msra.mxu0 0
    %646 = vmatpush.bf16.xpose.msra.mxu0 0
    %647 = vmatpush.bf16.xpose.msra.mxu0 0
    %648 = vmatpush.bf16.xpose.msra.mxu0 0
    %649 = vmatpush.bf16.xpose.msra.mxu0 0
    %650 = vmatpush.bf16.xpose.msra.mxu0 0
    %651 = vmatpush.bf16.xpose.msra.mxu0 0
    %652 = vmatpush.bf16.xpose.msra.mxu0 %v293
    %653 = vmatmul.bf16.gmra.mxu0 %v129
    %v654 = vpop.f32.mrf.mxu0
    %v655 = vadd.f32 %v642, %v654
    %v656 = vpop.f32.mrf.mxu0
    %657 = vdwg.mxu0
    %658 = vmatpush.bf16.xpose.msra.mxu0 0
    %659 = vmatpush.bf16.xpose.msra.mxu0 0
    %660 = vmatpush.bf16.xpose.msra.mxu0 0
    %661 = vmatpush.bf16.xpose.msra.mxu0 0
    %662 = vmatpush.bf16.xpose.msra.mxu0 0
    %663 = vmatpush.bf16.xpose.msra.mxu0 0
    %664 = vmatpush.bf16.xpose.msra.mxu0 0
    %665 = vmatpush.bf16.xpose.msra.mxu0 %v294
    %666 = vmatmul.bf16.gmra.mxu0 %v130
    %v667 = vpop.f32.mrf.mxu0
    %v668 = vadd.f32 %v655, %v667
    %v669 = vpop.f32.mrf.mxu0
    %670 = vdwg.mxu0
    %671 = vmatpush.bf16.xpose.msra.mxu0 0
    %672 = vmatpush.bf16.xpose.msra.mxu0 0
    %673 = vmatpush.bf16.xpose.msra.mxu0 0
    %674 = vmatpush.bf16.xpose.msra.mxu0 0
    %675 = vmatpush.bf16.xpose.msra.mxu0 0
    %676 = vmatpush.bf16.xpose.msra.mxu0 0
    %677 = vmatpush.bf16.xpose.msra.mxu0 0
    %678 = vmatpush.bf16.xpose.msra.mxu0 %v295
    %679 = vmatmul.bf16.gmra.mxu0 %v131
    %v680 = vpop.f32.mrf.mxu0
    %v681 = vadd.f32 %v668, %v680
    %v682 = vpop.f32.mrf.mxu0
    %683 = vdwg.mxu0
    %684 = vmatpush.bf16.xpose.msra.mxu0 0
    %685 = vmatpush.bf16.xpose.msra.mxu0 0
    %686 = vmatpush.bf16.xpose.msra.mxu0 0
    %687 = vmatpush.bf16.xpose.msra.mxu0 0
    %688 = vmatpush.bf16.xpose.msra.mxu0 0
    %689 = vmatpush.bf16.xpose.msra.mxu0 0
    %690 = vmatpush.bf16.xpose.msra.mxu0 0
    %691 = vmatpush.bf16.xpose.msra.mxu0 %v296
    %692 = vmatmul.bf16.gmra.mxu0 %v132
    %v693 = vpop.f32.mrf.mxu0
    %v694 = vadd.f32 %v681, %v693
    %v695 = vpop.f32.mrf.mxu0
    %696 = vdwg.mxu0
    %697 = vmatpush.bf16.xpose.msra.mxu0 0
    %698 = vmatpush.bf16.xpose.msra.mxu0 0
    %699 = vmatpush.bf16.xpose.msra.mxu0 0
    %700 = vmatpush.bf16.xpose.msra.mxu0 0
    %701 = vmatpush.bf16.xpose.msra.mxu0 0
    %702 = vmatpush.bf16.xpose.msra.mxu0 0
    %703 = vmatpush.bf16.xpose.msra.mxu0 0
    %704 = vmatpush.bf16.xpose.msra.mxu0 %v297
    %705 = vmatmul.bf16.gmra.mxu0 %v133
    %v706 = vpop.f32.mrf.mxu0
    %v707 = vadd.f32 %v694, %v706
    %v708 = vpop.f32.mrf.mxu0
    %709 = vdwg.mxu0
    %710 = vmatpush.bf16.xpose.msra.mxu0 0
    %711 = vmatpush.bf16.xpose.msra.mxu0 0
    %712 = vmatpush.bf16.xpose.msra.mxu0 0
    %713 = vmatpush.bf16.xpose.msra.mxu0 0
    %714 = vmatpush.bf16.xpose.msra.mxu0 0
    %715 = vmatpush.bf16.xpose.msra.mxu0 0
    %716 = vmatpush.bf16.xpose.msra.mxu0 0
    %717 = vmatpush.bf16.xpose.msra.mxu0 %v298
    %718 = vmatmul.bf16.gmra.mxu0 %v134
    %v719 = vpop.f32.mrf.mxu0
    %v720 = vadd.f32 %v707, %v719
    %v721 = vpop.f32.mrf.mxu0
    %722 = vdwg.mxu0
    %723 = vmatpush.bf16.xpose.msra.mxu0 0
    %724 = vmatpush.bf16.xpose.msra.mxu0 0
    %725 = vmatpush.bf16.xpose.msra.mxu0 0
    %726 = vmatpush.bf16.xpose.msra.mxu0 0
    %727 = vmatpush.bf16.xpose.msra.mxu0 0
    %728 = vmatpush.bf16.xpose.msra.mxu0 0
    %729 = vmatpush.bf16.xpose.msra.mxu0 0
    %730 = vmatpush.bf16.xpose.msra.mxu0 %v299
    %731 = vmatmul.bf16.gmra.mxu0 %v135
    %v732 = vpop.f32.mrf.mxu0
    %v733 = vadd.f32 %v720, %v732
    %v734 = vpop.f32.mrf.mxu0
    %735 = vdwg.mxu0
    %736 = vmatpush.bf16.xpose.msra.mxu0 0
    %737 = vmatpush.bf16.xpose.msra.mxu0 0
    %738 = vmatpush.bf16.xpose.msra.mxu0 0
    %739 = vmatpush.bf16.xpose.msra.mxu0 0
    %740 = vmatpush.bf16.xpose.msra.mxu0 0
    %741 = vmatpush.bf16.xpose.msra.mxu0 0
    %742 = vmatpush.bf16.xpose.msra.mxu0 0
    %743 = vmatpush.bf16.xpose.msra.mxu0 %v300
    %744 = vmatmul.bf16.gmra.mxu0 %v136
    %v745 = vpop.f32.mrf.mxu0
    %v746 = vadd.f32 %v733, %v745
    %v747 = vpop.f32.mrf.mxu0
    %748 = vdwg.mxu0
    %vm749 = vcmask 74752
    %750 = vst.msk [vmem:[#allocation2] sm:$0x3] %vm749, %v746
    // Predicated region
    $region14: #{prediction_layer.1} parent=1 // pred_check
      _
    $region15: #{prediction_layer.1} parent=1 // pred_check_branch
      %752 = sbr.rel (0) target = $region17
    $region16: #{prediction_layer.1} parent=1 // pred_region
      %754 = vsyncadd [#allocation3], 0
      %s756 = sshll.u32 [#allocation2], 4
      %s757 = int_to_ptr.vmem [resolvable:$true] %s756
      %s758 = sshll.u32 %s3, 4
      %s759 = int_to_ptr.hbm [resolvable:$true] %s758
      %761 = dma.vmem_to_hbm [thread:$0]  %s757, 32, %s759, [#allocation3]
    $region17: #{prediction_layer.1} parent=1 // pred_fallthru
      _
    // Predicated region
    $region18: #{prediction_layer.1} parent=1 // pred_check
      _
    $region19: #{prediction_layer.1} parent=1 // pred_check_branch
      %763 = sbr.rel (0) target = $region21
    $region20: #{prediction_layer.1} parent=1 // pred_region
      %765 = dma.done [#allocation3], 32
    $region21: #{prediction_layer.1} parent=1 // pred_fallthru
      _
    %766 = vsyncpa [#allocation3], 1

</llo_original>
